<compile_context>
chip_gen: v5e
topology: v5e:2x2
jax: 0.10.0
libtpu: 0.0.40
codegen_flags: <defaults>
</compile_context>

<pallas_src>
import jax
import jax.numpy as jnp
from jax.experimental import pallas as pl
from jax.experimental.pallas import tpu as pltpu

LANES = 128
MAX_BLOCK_ROWS = 1024      # 1024 x 128 f32 block = 512 KiB per input per step
NUM_PARTIALS = 2           # "parallel" leading grid axis (both TCs on v7x)
PAD_LOGIT = -1e4           # finite; sigmoid(-1e4) == 0.0 exactly in f32


def _sublane_multiple(dtype):
    # f32 -> 8, bf16/f16 -> 16, int8/fp8 -> 32 (sub-32-bit dtypes pack sublanes)
    itemsize = jnp.dtype(dtype).itemsize
    return 8 * max(1, 4 // int(itemsize))


def _tversky_partial_kernel(x_ref, t_ref, tp_ref, sp_ref, st_ref):
    # Resident output accumulators are zeroed on the first step of the
    # reduction ("arbitrary") axis of each partial.
    @pl.when(pl.program_id(1) == 0)
    def _():
        tp_ref[...] = jnp.zeros_like(tp_ref)
        sp_ref[...] = jnp.zeros_like(sp_ref)
        st_ref[...] = jnp.zeros_like(st_ref)

    p = jax.nn.sigmoid(x_ref[...].astype(jnp.float32))
    t = t_ref[...].astype(jnp.float32)

    # Only TP / sum(p) / sum(t); FP and FN are derived in the wrapper.
    tp_ref[...] += p * t
    sp_ref[...] += p
    st_ref[...] += t


def tversky_loss(inputs, targets, smooth=1.0, alpha=0.3, beta=0.7):
    x = inputs.reshape(-1)           # keep native dtype; cast in-kernel
    t = targets.reshape(-1)
    n = x.shape[0]

    sub = max(_sublane_multiple(x.dtype), _sublane_multiple(t.dtype))
    rows_needed = pl.cdiv(n, LANES)
    block_rows = min(MAX_BLOCK_ROWS, ((rows_needed + sub - 1) // sub) * sub)
    chunk = block_rows * LANES
    num_blocks = pl.cdiv(n, chunk)
    steps = pl.cdiv(num_blocks, NUM_PARTIALS)
    n_pad = NUM_PARTIALS * steps * chunk
    pad = n_pad - n

    # Mask-free padding: logits -> very negative (sigmoid == 0), targets -> 0,
    # so padded elements contribute nothing to TP, sum(p) or sum(t).
    x = jnp.pad(x, (0, pad), constant_values=PAD_LOGIT)
    t = jnp.pad(t, (0, pad))

    rows = n_pad // LANES
    x2 = x.reshape(rows, LANES)
    t2 = t.reshape(rows, LANES)

    in_spec = pl.BlockSpec((block_rows, LANES), lambda p, i: (p * steps + i, 0))
    acc_spec = pl.BlockSpec((None, block_rows, LANES), lambda p, i: (p, 0, 0))
    acc_shape = jax.ShapeDtypeStruct((NUM_PARTIALS, block_rows, LANES), jnp.float32)

    tp_v, sp_v, st_v = pl.pallas_call(
        _tversky_partial_kernel,
        out_shape=(acc_shape, acc_shape, acc_shape),
        grid=(NUM_PARTIALS, steps),
        in_specs=[in_spec, in_spec],
        out_specs=(acc_spec, acc_spec, acc_spec),
        compiler_params=pltpu.CompilerParams(
            dimension_semantics=("parallel", "arbitrary"),
        ),
    )(x2, t2)

    # Single cross-lane/sublane reduction outside the hot loop.
    TP = jnp.sum(tp_v)
    Sp = jnp.sum(sp_v)
    St = jnp.sum(st_v)
    FP = Sp - TP
    FN = St - TP
    tversky = (TP + smooth) / (TP + alpha * FP + beta * FN + smooth)
    return 1.0 - tversky


def _reference(inputs, targets, smooth=1.0, alpha=0.3, beta=0.7):
    p = jax.nn.sigmoid(inputs.reshape(-1).astype(jnp.float32))
    t = targets.reshape(-1).astype(jnp.float32)
    TP = jnp.sum(p * t)
    FP = jnp.sum((1.0 - t) * p)
    FN = jnp.sum(t * (1.0 - p))
    return 1.0 - (TP + smooth) / (TP + alpha * FP + beta * FN + smooth)


if __name__ == "__main__":
    key = jax.random.PRNGKey(0)
    k1, k2 = jax.random.split(key)
    # NCHW, same convention as the PyTorch module's segmentation inputs.
    x = jax.random.normal(k1, (2, 4, 16, 16), dtype=jnp.float32)              # logits
    y = (jax.random.uniform(k2, (2, 4, 16, 16)) > 0.5).astype(jnp.float32)    # binary mask

    loss = jax.block_until_ready(tversky_loss(x, y))
    ref = _reference(x, y)
    assert jnp.allclose(loss, ref, rtol=1e-5, atol=1e-6), (loss, ref)
    print("KERNEL_OK")
</pallas_src>

<mosaic_0001>
module attributes {stable_mosaic.version = 11 : i64} {
  func.func @_tversky_partial_kernel(%arg0: i32, %arg1: i32, %arg2: memref<16x128xf32, #tpu.memory_space<vmem>>, %arg3: memref<16x128xf32, #tpu.memory_space<vmem>>, %arg4: memref<1x16x128xf32, #tpu.memory_space<vmem>>, %arg5: memref<1x16x128xf32, #tpu.memory_space<vmem>>, %arg6: memref<1x16x128xf32, #tpu.memory_space<vmem>>) attributes {dimension_semantics = [#tpu.dimension_semantics<parallel>, #tpu.dimension_semantics<arbitrary>], iteration_bounds = array<i64: 2, 1>, scalar_prefetch = 0 : i64, scratch_operands = 0 : i64, tpu.core_type = #tpu.core_type<tc>, window_params = [{transform_indices = @transform_0, window_bounds = array<i64: 16, 128>}, {transform_indices = @transform_1, window_bounds = array<i64: 16, 128>}, {transform_indices = @transform_2, window_bounds = array<i64: 1, 16, 128>}, {transform_indices = @transform_3, window_bounds = array<i64: 1, 16, 128>}, {transform_indices = @transform_4, window_bounds = array<i64: 1, 16, 128>}]} {
    %c0_i32 = arith.constant 0 : i32
    %0 = arith.cmpi eq, %arg1, %c0_i32 : i32
    %1 = arith.extui %0 : i1 to i32
    %c0_i32_0 = arith.constant 0 : i32
    %2 = arith.cmpi ne, %1, %c0_i32_0 : i32
    scf.if %2 {
      %cst_22 = arith.constant 0.000000e+00 : f32
      %29 = vector.broadcast %cst_22 : f32 to vector<16x128xf32>
      %c0_23 = arith.constant 0 : index
      %c0_24 = arith.constant 0 : index
      %c0_25 = arith.constant 0 : index
      %30 = vector.load %arg4[%c0_23, %c0_24, %c0_25] : memref<1x16x128xf32, #tpu.memory_space<vmem>>, vector<1x16x128xf32>
      %31 = vector.shape_cast %30 : vector<1x16x128xf32> to vector<16x128xf32>
      %32 = vector.shape_cast %29 : vector<16x128xf32> to vector<1x16x128xf32>
      tpu.vector_store %arg4[%c0_23, %c0_24, %c0_25], %32 {strides = array<i32>} : memref<1x16x128xf32, #tpu.memory_space<vmem>>, vector<1x16x128xf32>,
      %cst_26 = arith.constant 0.000000e+00 : f32
      %33 = vector.broadcast %cst_26 : f32 to vector<16x128xf32>
      %c0_27 = arith.constant 0 : index
      %c0_28 = arith.constant 0 : index
      %c0_29 = arith.constant 0 : index
      %34 = vector.load %arg5[%c0_27, %c0_28, %c0_29] : memref<1x16x128xf32, #tpu.memory_space<vmem>>, vector<1x16x128xf32>
      %35 = vector.shape_cast %34 : vector<1x16x128xf32> to vector<16x128xf32>
      %36 = vector.shape_cast %33 : vector<16x128xf32> to vector<1x16x128xf32>
      tpu.vector_store %arg5[%c0_27, %c0_28, %c0_29], %36 {strides = array<i32>} : memref<1x16x128xf32, #tpu.memory_space<vmem>>, vector<1x16x128xf32>,
      %cst_30 = arith.constant 0.000000e+00 : f32
      %37 = vector.broadcast %cst_30 : f32 to vector<16x128xf32>
      %c0_31 = arith.constant 0 : index
      %c0_32 = arith.constant 0 : index
      %c0_33 = arith.constant 0 : index
      %38 = vector.load %arg6[%c0_31, %c0_32, %c0_33] : memref<1x16x128xf32, #tpu.memory_space<vmem>>, vector<1x16x128xf32>
      %39 = vector.shape_cast %38 : vector<1x16x128xf32> to vector<16x128xf32>
      %40 = vector.shape_cast %37 : vector<16x128xf32> to vector<1x16x128xf32>
      tpu.vector_store %arg6[%c0_31, %c0_32, %c0_33], %40 {strides = array<i32>} : memref<1x16x128xf32, #tpu.memory_space<vmem>>, vector<1x16x128xf32>,
    } else {
    }
    %c0 = arith.constant 0 : index
    %c0_1 = arith.constant 0 : index
    %3 = vector.load %arg2[%c0, %c0_1] : memref<16x128xf32, #tpu.memory_space<vmem>>, vector<16x128xf32>
    %4 = arith.negf %3 : vector<16x128xf32>
    %5 = math.exp %4 : vector<16x128xf32>
    %cst = arith.constant 1.000000e+00 : f32
    %6 = vector.broadcast %cst : f32 to vector<16x128xf32>
    %7 = arith.addf %6, %5 : vector<16x128xf32>
    %8 = arith.divf %6, %7 : vector<16x128xf32>
    %c0_2 = arith.constant 0 : index
    %c0_3 = arith.constant 0 : index
    %9 = vector.load %arg3[%c0_2, %c0_3] : memref<16x128xf32, #tpu.memory_space<vmem>>, vector<16x128xf32>
    %c0_4 = arith.constant 0 : index
    %c0_5 = arith.constant 0 : index
    %c0_6 = arith.constant 0 : index
    %10 = vector.load %arg4[%c0_4, %c0_5, %c0_6] : memref<1x16x128xf32, #tpu.memory_space<vmem>>, vector<1x16x128xf32>
    %11 = vector.shape_cast %10 : vector<1x16x128xf32> to vector<16x128xf32>
    %12 = arith.mulf %8, %9 : vector<16x128xf32>
    %13 = arith.addf %11, %12 : vector<16x128xf32>
    %c0_7 = arith.constant 0 : index
    %c0_8 = arith.constant 0 : index
    %c0_9 = arith.constant 0 : index
    %14 = vector.load %arg4[%c0_7, %c0_8, %c0_9] : memref<1x16x128xf32, #tpu.memory_space<vmem>>, vector<1x16x128xf32>
    %15 = vector.shape_cast %14 : vector<1x16x128xf32> to vector<16x128xf32>
    %16 = vector.shape_cast %13 : vector<16x128xf32> to vector<1x16x128xf32>
    tpu.vector_store %arg4[%c0_7, %c0_8, %c0_9], %16 {strides = array<i32>} : memref<1x16x128xf32, #tpu.memory_space<vmem>>, vector<1x16x128xf32>,
    %c0_10 = arith.constant 0 : index
    %c0_11 = arith.constant 0 : index
    %c0_12 = arith.constant 0 : index
    %17 = vector.load %arg5[%c0_10, %c0_11, %c0_12] : memref<1x16x128xf32, #tpu.memory_space<vmem>>, vector<1x16x128xf32>
    %18 = vector.shape_cast %17 : vector<1x16x128xf32> to vector<16x128xf32>
    %19 = arith.addf %18, %8 : vector<16x128xf32>
    %c0_13 = arith.constant 0 : index
    %c0_14 = arith.constant 0 : index
    %c0_15 = arith.constant 0 : index
    %20 = vector.load %arg5[%c0_13, %c0_14, %c0_15] : memref<1x16x128xf32, #tpu.memory_space<vmem>>, vector<1x16x128xf32>
    %21 = vector.shape_cast %20 : vector<1x16x128xf32> to vector<16x128xf32>
    %22 = vector.shape_cast %19 : vector<16x128xf32> to vector<1x16x128xf32>
    tpu.vector_store %arg5[%c0_13, %c0_14, %c0_15], %22 {strides = array<i32>} : memref<1x16x128xf32, #tpu.memory_space<vmem>>, vector<1x16x128xf32>,
    %c0_16 = arith.constant 0 : index
    %c0_17 = arith.constant 0 : index
    %c0_18 = arith.constant 0 : index
    %23 = vector.load %arg6[%c0_16, %c0_17, %c0_18] : memref<1x16x128xf32, #tpu.memory_space<vmem>>, vector<1x16x128xf32>
    %24 = vector.shape_cast %23 : vector<1x16x128xf32> to vector<16x128xf32>
    %25 = arith.addf %24, %9 : vector<16x128xf32>
    %c0_19 = arith.constant 0 : index
    %c0_20 = arith.constant 0 : index
    %c0_21 = arith.constant 0 : index
    %26 = vector.load %arg6[%c0_19, %c0_20, %c0_21] : memref<1x16x128xf32, #tpu.memory_space<vmem>>, vector<1x16x128xf32>
    %27 = vector.shape_cast %26 : vector<1x16x128xf32> to vector<16x128xf32>
    %28 = vector.shape_cast %25 : vector<16x128xf32> to vector<1x16x128xf32>
    tpu.vector_store %arg6[%c0_19, %c0_20, %c0_21], %28 {strides = array<i32>} : memref<1x16x128xf32, #tpu.memory_space<vmem>>, vector<1x16x128xf32>,
    return
  }
  func.func @transform_0(%arg0: i32, %arg1: i32) -> (i32, i32) {
    %c1_i32 = arith.constant 1 : i32
    %0 = arith.muli %arg0, %c1_i32 : i32
    %1 = arith.addi %0, %arg1 : i32
    %c0_i32 = arith.constant 0 : i32
    %c0_i32_0 = arith.constant 0 : i32
    return %1, %c0_i32 : i32, i32
  }
  func.func @transform_1(%arg0: i32, %arg1: i32) -> (i32, i32) {
    %c1_i32 = arith.constant 1 : i32
    %0 = arith.muli %arg0, %c1_i32 : i32
    %1 = arith.addi %0, %arg1 : i32
    %c0_i32 = arith.constant 0 : i32
    %c0_i32_0 = arith.constant 0 : i32
    return %1, %c0_i32 : i32, i32
  }
  func.func @transform_2(%arg0: i32, %arg1: i32) -> (i32, i32, i32) {
    %c0_i32 = arith.constant 0 : i32
    %c0_i32_0 = arith.constant 0 : i32
    %c0_i32_1 = arith.constant 0 : i32
    return %arg0, %c0_i32, %c0_i32_0 : i32, i32, i32
  }
  func.func @transform_3(%arg0: i32, %arg1: i32) -> (i32, i32, i32) {
    %c0_i32 = arith.constant 0 : i32
    %c0_i32_0 = arith.constant 0 : i32
    %c0_i32_1 = arith.constant 0 : i32
    return %arg0, %c0_i32, %c0_i32_0 : i32, i32, i32
  }
  func.func @transform_4(%arg0: i32, %arg1: i32) -> (i32, i32, i32) {
    %c0_i32 = arith.constant 0 : i32
    %c0_i32_0 = arith.constant 0 : i32
    %c0_i32_1 = arith.constant 0 : i32
    return %arg0, %c0_i32, %c0_i32_0 : i32, i32, i32
  }
}

</mosaic_0001>

<llo_original>
// kernel: tpu_custom_call.1
$region0: #{tpu_custom_call.1}
  #allocation0 [shape = 'u32[]', space=smem, size = 0x4, offset = 0x4, fixed_abs, tag = 'smem constant byte address 0x4 - core index']
  #allocation1 [shape = 'u32[72,128]{1,0:T(1,128)}', space=vmem, size = 0x9000, scoped, tag = 'internal scratch']
  %s0 = inlined_call_operand.hbm [shape: f32[32,128], index: 0, kind: input, shape index: {}]
  %s1 = inlined_call_operand.hbm [shape: f32[32,128], index: 1, kind: input, shape index: {}]
  %s2 = inlined_call_operand.hbm [shape: f32[2,16,128], index: 2, kind: output, shape index: {0}]
  %s3 = inlined_call_operand.hbm [shape: f32[2,16,128], index: 3, kind: output, shape index: {1}]
  %s4 = inlined_call_operand.hbm [shape: f32[2,16,128], index: 4, kind: output, shape index: {2}]
  %5 = xla_tuple %s2, %s3, %s4
  %s6 = sld [smem:[#allocation0]]
  $region69: #{tpu_custom_call.1} parent=0
    _
  %s8 = ssub.s32 1, %s6
  %s9 = scalar_select 0, %s8, %s6
  $region1: #{tpu_custom_call.1} parent=0
    #allocation2 [shape = 'u8[16384]{0}', space=vmem, size = 0x4000, scoped, tag = 'input window, operand 0']
    #allocation3 [shape = 's32[2]{0}', space=sflag, size = 0x8, scoped, tag = 'scoped memory for tpu_custom_call.1']
    #allocation4 [shape = 's32[2]{0}', space=sflag, size = 0x8, scoped, tag = 'scoped memory for tpu_custom_call.1']
    #allocation5 [shape = 'u8[16384]{0}', space=vmem, size = 0x4000, scoped, tag = 'input window, operand 1']
    #allocation6 [shape = 's32[2]{0}', space=sflag, size = 0x8, scoped, tag = 'scoped memory for tpu_custom_call.1']
    #allocation7 [shape = 'u8[16384]{0}', space=vmem, size = 0x4000, scoped, tag = 'output window, operand 0']
    #allocation8 [shape = 'u8[16384]{0}', space=vmem, size = 0x4000, scoped, tag = 'output window, operand 1']
    #allocation9 [shape = 's32[2]{0}', space=sflag, size = 0x8, scoped, tag = 'scoped memory for tpu_custom_call.1']
    #allocation10 [shape = 'u8[16384]{0}', space=vmem, size = 0x4000, scoped, tag = 'output window, operand 2']
    %10 = vsyncpa [#allocation3], 0
    %s11 = scalar_lea.sflag [#allocation3], 1
    %12 = vsyncpa %s11, 0
    %13 = vsyncpa [#allocation6], 0
    %s14 = scalar_lea.sflag [#allocation6], 1
    %15 = vsyncpa %s14, 0
    %16 = vsyncpa [#allocation4], 0
    %s17 = scalar_lea.sflag [#allocation4], 1
    %18 = vsyncpa %s17, 0
    %19 = vsyncpa [#allocation9], 0
    %s20 = scalar_lea.sflag [#allocation9], 1
    %21 = vsyncpa %s20, 0
    loop: start=0, step=1, limit=4
    $region2: #{tpu_custom_call.1} parent=1 // loop_pre_header
      _
    $region3: #{tpu_custom_call.1} parent=1 // loop_header
      %s23 = sphi 0, %s27
      %p24 = scmp.ge.s32.totalorder %s23, 4
      %s30 = sphi 0, %s42
      %s31 = sphi 0, %s38
      %s32 = sphi 0, %s30
      %s33 = sphi 0, %s31
      %s34 = sphi 0, %s32
      %s35 = sphi 0, %s33
      %s47 = sphi 0, %s49
      %s50 = sphi 0, %s47
      %s51 = sphi 0, %s50
      %s67 = sphi 0, %s51
      %s75 = sphi 0, %s77
      %s78 = sphi 0, %s75
      %s79 = sphi 0, %s78
      %s95 = sphi 0, %s79
      %s101 = sphi 0, %s103
      %s104 = sphi 0, %s101
      %s105 = sphi 0, %s104
      %s121 = sphi 0, %s105
      %s127 = sphi 0, %s129
      %s130 = sphi 0, %s127
      %s131 = sphi 0, %s130
      %s147 = sphi 0, %s131
      %s153 = sphi 0, %s155
      %s156 = sphi 0, %s153
      %s157 = sphi 0, %s156
      %s173 = sphi 0, %s157
    $region4: #{tpu_custom_call.1} parent=1 // loop_header_branch
      %26 = sbr.rel (%p24) target = $region8
    $region5: #{tpu_custom_call.1} parent=1 // loop_body
      %s28 = ssub.s32 %s23, 1
      %s29 = ssub.s32 %s23, 2
      %s36 = sadd.s32 1, %s31
      %p37 = scmp.ge.s32.totalorder %s36, 1
      %s38 = scalar_select %p37, 0, %s36
      %s39 = sadd.s32 1, %s30
      %s40 = scalar_select %p37, %s39, %s30
      %p41 = scmp.ge.s32.totalorder %s40, 2
      %s42 = scalar_select %p41, 0, %s40
      %s43 = sadd.s32 %s30, %s31
      %s44 = sadd.s32 %s42, %s38
      %s45 = ssub.s32 %s43, %s44
      %p46 = scmp.eq.s32.totalorder %s45, 0
      %s48 = sadd.s32 %s47, 1
      %s49 = scalar_select %p46, %s47, %s48
      %p52 = pneg %p46
      %p53 = scmp.eq.s32.totalorder %s23, 1
      %p54 = por %p52, %p53
      %p55 = scmp.ne.s32.totalorder %s47, %s50
      %p56 = scmp.eq.s32.totalorder %s23, 0
      %p57 = por %p55, %p56
      %p58 = scmp.ne.s32.totalorder %s47, %s50
      %p59 = scmp.eq.s32.totalorder %s28, 1
      %p60 = por %p58, %p59
      %p61 = scmp.ne.s32.totalorder %s50, %s51
      %p62 = scmp.eq.s32.totalorder %s28, 0
      %p63 = por %p61, %p62
      %p64 = scmp.ne.s32.totalorder %s50, %s51
      %p65 = scmp.eq.s32.totalorder %s29, 1
      %p66 = por %p64, %p65
      %p68 = scmp.ne.s32.totalorder %s51, %s67
      %p69 = scmp.eq.s32.totalorder %s29, 0
      %p70 = por %p68, %p69
      %s71 = sadd.s32 %s30, %s31
      %s72 = sadd.s32 %s42, %s38
      %s73 = ssub.s32 %s71, %s72
      %p74 = scmp.eq.s32.totalorder %s73, 0
      %s76 = sadd.s32 %s75, 1
      %s77 = scalar_select %p74, %s75, %s76
      %p80 = pneg %p74
      %p81 = scmp.eq.s32.totalorder %s23, 1
      %p82 = por %p80, %p81
      %p83 = scmp.ne.s32.totalorder %s75, %s78
      %p84 = scmp.eq.s32.totalorder %s23, 0
      %p85 = por %p83, %p84
      %p86 = scmp.ne.s32.totalorder %s75, %s78
      %p87 = scmp.eq.s32.totalorder %s28, 1
      %p88 = por %p86, %p87
      %p89 = scmp.ne.s32.totalorder %s78, %s79
      %p90 = scmp.eq.s32.totalorder %s28, 0
      %p91 = por %p89, %p90
      %p92 = scmp.ne.s32.totalorder %s78, %s79
      %p93 = scmp.eq.s32.totalorder %s29, 1
      %p94 = por %p92, %p93
      %p96 = scmp.ne.s32.totalorder %s79, %s95
      %p97 = scmp.eq.s32.totalorder %s29, 0
      %p98 = por %p96, %p97
      %s99 = ssub.s32 %s30, %s42
      %p100 = scmp.eq.s32.totalorder %s99, 0
      %s102 = sadd.s32 %s101, 1
      %s103 = scalar_select %p100, %s101, %s102
      %p106 = pneg %p100
      %p107 = scmp.eq.s32.totalorder %s23, 1
      %p108 = por %p106, %p107
      %p109 = scmp.ne.s32.totalorder %s101, %s104
      %p110 = scmp.eq.s32.totalorder %s23, 0
      %p111 = por %p109, %p110
      %p112 = scmp.ne.s32.totalorder %s101, %s104
      %p113 = scmp.eq.s32.totalorder %s28, 1
      %p114 = por %p112, %p113
      %p115 = scmp.ne.s32.totalorder %s104, %s105
      %p116 = scmp.eq.s32.totalorder %s28, 0
      %p117 = por %p115, %p116
      %p118 = scmp.ne.s32.totalorder %s104, %s105
      %p119 = scmp.eq.s32.totalorder %s29, 1
      %p120 = por %p118, %p119
      %p122 = scmp.ne.s32.totalorder %s105, %s121
      %p123 = scmp.eq.s32.totalorder %s29, 0
      %p124 = por %p122, %p123
      %s125 = ssub.s32 %s30, %s42
      %p126 = scmp.eq.s32.totalorder %s125, 0
      %s128 = sadd.s32 %s127, 1
      %s129 = scalar_select %p126, %s127, %s128
      %p132 = pneg %p126
      %p133 = scmp.eq.s32.totalorder %s23, 1
      %p134 = por %p132, %p133
      %p135 = scmp.ne.s32.totalorder %s127, %s130
      %p136 = scmp.eq.s32.totalorder %s23, 0
      %p137 = por %p135, %p136
      %p138 = scmp.ne.s32.totalorder %s127, %s130
      %p139 = scmp.eq.s32.totalorder %s28, 1
      %p140 = por %p138, %p139
      %p141 = scmp.ne.s32.totalorder %s130, %s131
      %p142 = scmp.eq.s32.totalorder %s28, 0
      %p143 = por %p141, %p142
      %p144 = scmp.ne.s32.totalorder %s130, %s131
      %p145 = scmp.eq.s32.totalorder %s29, 1
      %p146 = por %p144, %p145
      %p148 = scmp.ne.s32.totalorder %s131, %s147
      %p149 = scmp.eq.s32.totalorder %s29, 0
      %p150 = por %p148, %p149
      %s151 = ssub.s32 %s30, %s42
      %p152 = scmp.eq.s32.totalorder %s151, 0
      %s154 = sadd.s32 %s153, 1
      %s155 = scalar_select %p152, %s153, %s154
      %p158 = pneg %p152
      %p159 = scmp.eq.s32.totalorder %s23, 1
      %p160 = por %p158, %p159
      %p161 = scmp.ne.s32.totalorder %s153, %s156
      %p162 = scmp.eq.s32.totalorder %s23, 0
      %p163 = por %p161, %p162
      %p164 = scmp.ne.s32.totalorder %s153, %s156
      %p165 = scmp.eq.s32.totalorder %s28, 1
      %p166 = por %p164, %p165
      %p167 = scmp.ne.s32.totalorder %s156, %s157
      %p168 = scmp.eq.s32.totalorder %s28, 0
      %p169 = por %p167, %p168
      %p170 = scmp.ne.s32.totalorder %s156, %s157
      %p171 = scmp.eq.s32.totalorder %s29, 1
      %p172 = por %p170, %p171
      %p174 = scmp.ne.s32.totalorder %s157, %s173
      %p175 = scmp.eq.s32.totalorder %s29, 0
      %p176 = por %p174, %p175
      %p177 = scmp.le.s32.totalorder 1, %s23
      %p178 = scmp.lt.s32.totalorder %s23, 3
      %p179 = pnand %p177, %p178
      %p180 = pneg %p179
      // Predicated region
      $region9: #{tpu_custom_call.1} parent=5 // pred_check
        _
      $region10: #{tpu_custom_call.1} parent=5 // pred_check_branch
        %182 = sbr.rel (%p179) target = $region12
      $region11: #{tpu_custom_call.1} parent=5 // pred_region
        %s183 = ssub.s32 %s23, 1
      $region12: #{tpu_custom_call.1} parent=5 // pred_fallthru
        _
      %p184 = scmp.lt.s32.totalorder %s23, 2
      // Predicated region
      $region13: #{tpu_custom_call.1} parent=5 // pred_check
        %p185 = pneg %p184
      $region14: #{tpu_custom_call.1} parent=5 // pred_check_branch
        %187 = sbr.rel (%p185) target = $region16
      $region15: #{tpu_custom_call.1} parent=5 // pred_region
        // Predicated region
        $region17: #{tpu_custom_call.1} parent=15 // pred_check
          %p188 = pneg %p57
        $region18: #{tpu_custom_call.1} parent=15 // pred_check_branch
          %190 = sbr.rel (%p188) target = $region20
        $region19: #{tpu_custom_call.1} parent=15 // pred_region
          %s191 = sand.u32 %s47, 1
          %s192 = scalar_lea.sflag [#allocation3], %s191
          %s193 = sand.u32 %s47, 1
          %s194 = smul.addr %s193, 16
          %s195 = scalar_lea.vmem [#allocation2], %s194
          %s196 = sadd.s32 %s30, %s31
          %s197 = smul.u32 2, %s196
          %199 = vsyncadd %s192, 0
          %s200 = smul.addr %s197, 8
          %s201 = scalar_lea.hbm %s0, %s200
          %s202 = sshll.u32 %s201, 4
          %s203 = int_to_ptr.hbm [resolvable:$true] %s202
          %s204 = sshll.u32 %s195, 4
          %s205 = int_to_ptr.vmem [resolvable:$true] %s204
          %210 = dma.hbm_to_vmem [thread:$0]  %s203, 256, %s205, %s192, 128, 128, 8
        $region20: #{tpu_custom_call.1} parent=15 // pred_fallthru
          _
        // Predicated region
        $region21: #{tpu_custom_call.1} parent=15 // pred_check
          %p211 = pneg %p85
        $region22: #{tpu_custom_call.1} parent=15 // pred_check_branch
          %213 = sbr.rel (%p211) target = $region24
        $region23: #{tpu_custom_call.1} parent=15 // pred_region
          %s214 = sand.u32 %s75, 1
          %s215 = scalar_lea.sflag [#allocation6], %s214
          %s216 = sand.u32 %s75, 1
          %s217 = smul.addr %s216, 16
          %s218 = scalar_lea.vmem [#allocation5], %s217
          %s219 = sadd.s32 %s30, %s31
          %s220 = smul.u32 2, %s219
          %222 = vsyncadd %s215, 0
          %s223 = smul.addr %s220, 8
          %s224 = scalar_lea.hbm %s1, %s223
          %s225 = sshll.u32 %s224, 4
          %s226 = int_to_ptr.hbm [resolvable:$true] %s225
          %s227 = sshll.u32 %s218, 4
          %s228 = int_to_ptr.vmem [resolvable:$true] %s227
          %233 = dma.hbm_to_vmem [thread:$0]  %s226, 256, %s228, %s215, 128, 128, 8
        $region24: #{tpu_custom_call.1} parent=15 // pred_fallthru
          _
      $region16: #{tpu_custom_call.1} parent=5 // pred_fallthru
        _
      %p234 = scmp.le.s32.totalorder 1, %s23
      %p235 = scmp.lt.s32.totalorder %s23, 3
      %p236 = pnand %p234, %p235
      %p237 = pneg %p236
      // Predicated region
      $region25: #{tpu_custom_call.1} parent=5 // pred_check
        _
      $region26: #{tpu_custom_call.1} parent=5 // pred_check_branch
        %239 = sbr.rel (%p236) target = $region28
      $region27: #{tpu_custom_call.1} parent=5 // pred_region
        %s240 = ssub.s32 %s23, 1
        %s241 = sand.u32 %s50, 1
        %s242 = scalar_lea.sflag [#allocation3], %s241
        %s243 = sand.u32 %s50, 1
        %s244 = smul.addr %s243, 16
        %s245 = scalar_lea.vmem [#allocation2], %s244
        // Predicated region
        $region29: #{tpu_custom_call.1} parent=27 // pred_check
          %p246 = pneg %p63
        $region30: #{tpu_custom_call.1} parent=27 // pred_check_branch
          %248 = sbr.rel (%p246) target = $region32
        $region31: #{tpu_custom_call.1} parent=27 // pred_region
          %250 = dma.done %s242, 256
        $region32: #{tpu_custom_call.1} parent=27 // pred_fallthru
          _
        %s251 = sand.u32 %s78, 1
        %s252 = scalar_lea.sflag [#allocation6], %s251
        %s253 = sand.u32 %s78, 1
        %s254 = smul.addr %s253, 16
        %s255 = scalar_lea.vmem [#allocation5], %s254
        // Predicated region
        $region33: #{tpu_custom_call.1} parent=27 // pred_check
          %p256 = pneg %p91
        $region34: #{tpu_custom_call.1} parent=27 // pred_check_branch
          %258 = sbr.rel (%p256) target = $region36
        $region35: #{tpu_custom_call.1} parent=27 // pred_region
          %260 = dma.done %s252, 256
        $region36: #{tpu_custom_call.1} parent=27 // pred_fallthru
          _
        %s261 = sand.u32 %s50, 1
        %s262 = scalar_lea.sflag [#allocation3], %s261
        %s263 = sand.u32 %s50, 1
        %s264 = smul.addr %s263, 16
        %s265 = scalar_lea.vmem [#allocation2], %s264
        %p266 = pneg %p63
        %p267 = pneg %p60
        %s268 = sand.u32 %s78, 1
        %s269 = scalar_lea.sflag [#allocation6], %s268
        %s270 = sand.u32 %s78, 1
        %s271 = smul.addr %s270, 16
        %s272 = scalar_lea.vmem [#allocation5], %s271
        %p273 = pneg %p91
        %p274 = pneg %p88
        %p275 = pneg %p117
        %p276 = pneg %p114
        %s277 = sand.u32 %s104, 1
        %s278 = scalar_lea.sflag [#allocation4], %s277
        %s279 = sand.u32 %s104, 1
        %s280 = smul.addr %s279, 16
        %s281 = scalar_lea.vmem [#allocation7], %s280
        %p282 = pneg %p143
        %p283 = pneg %p140
        %s284 = sand.u32 %s28, 1
        %s285 = scalar_lea.sflag [#allocation9], %s284
        %s286 = sand.u32 %s130, 1
        %s287 = smul.addr %s286, 16
        %s288 = scalar_lea.vmem [#allocation8], %s287
        %p289 = pneg %p169
        %p290 = pneg %p166
        %s291 = sand.u32 %s28, 1
        %s292 = scalar_lea.sflag [#allocation9], %s291
        %s293 = sand.u32 %s156, 1
        %s294 = smul.addr %s293, 16
        %s295 = scalar_lea.vmem [#allocation10], %s294
        %s296 = sadd.s32 %s32, %s33
        %s297 = smul.u32 2, %s296
        %s298 = sadd.s32 %s32, %s33
        %s299 = smul.u32 2, %s298
        %p300 = scmp.eq.s32.totalorder %s33, 0
        // Predicated region
        $region37: #{tpu_custom_call.1} parent=27 // pred_check
          %p301 = pneg %p300
        $region38: #{tpu_custom_call.1} parent=27 // pred_check_branch
          %303 = sbr.rel (%p301) target = $region40
        $region39: #{tpu_custom_call.1} parent=27 // pred_region
          %304 = vst [vmem:[%s281] sm:$0xff] 0.0
          %305 = vst [vmem:[%s281 + $0x8] sm:$0xff] 0.0
          %306 = vst [vmem:[%s288] sm:$0xff] 0.0
          %307 = vst [vmem:[%s288 + $0x8] sm:$0xff] 0.0
          %308 = vst [vmem:[%s295] sm:$0xff] 0.0
          %309 = vst [vmem:[%s295 + $0x8] sm:$0xff] 0.0
        $region40: #{tpu_custom_call.1} parent=27 // pred_fallthru
          _
        %v310 = vld [vmem:[%s245] sm:$0xff]
        %v311 = vld [vmem:[%s245 + $0x8] sm:$0xff]
        %v312 = vxor.u32 %v310, 2147483648
        %v313 = vxor.u32 %v311, 2147483648
        %v314 = vmul.f32 %v312, 1.442695
        %v315 = vpow.pop %v314
        %v316 = vmul.f32 %v313, 1.442695
        %v317 = vpow.pop %v316
        %v318 = vadd.f32 %v315, 1.0
        %v319 = vadd.f32 %v317, 1.0
        %v320 = vrcp.pop %v318
        %v321 = vmul.f32 %v318, %v320
        %v322 = vsub.f32 1.0, %v321
        %v323 = vmul.f32 %v320, %v322
        %v324 = vadd.f32 %v320, %v323
        %vm325 = vweird.f32 %v318
        %vm326 = vweird.f32 %v320
        %vm327 = vmor %vm325, %vm326
        %v328 = vsel %vm327, %v320, %v324
        %v329 = vand.u32 2147483647, %v318
        %vm330 = vcmp.eq.f32.partialorder %v329, 8.507059e+37
        %v331 = vand.u32 %v318, 2147483648
        %v332 = vor.u32 1.1754944e-38, %v331
        %v333 = vsel %vm330, %v332, %v328
        %v334 = vmul.f32 1.0, %v333
        %v335 = vrcp.pop %v319
        %v336 = vmul.f32 %v319, %v335
        %v337 = vsub.f32 1.0, %v336
        %v338 = vmul.f32 %v335, %v337
        %v339 = vadd.f32 %v335, %v338
        %vm340 = vweird.f32 %v319
        %vm341 = vweird.f32 %v335
        %vm342 = vmor %vm340, %vm341
        %v343 = vsel %vm342, %v335, %v339
        %v344 = vand.u32 2147483647, %v319
        %vm345 = vcmp.eq.f32.partialorder %v344, 8.507059e+37
        %v346 = vand.u32 %v319, 2147483648
        %v347 = vor.u32 1.1754944e-38, %v346
        %v348 = vsel %vm345, %v347, %v343
        %v349 = vmul.f32 1.0, %v348
        %v350 = vld [vmem:[%s255] sm:$0xff]
        %v351 = vld [vmem:[%s255 + $0x8] sm:$0xff]
        %v352 = vld [vmem:[%s281] sm:$0xff]
        %v353 = vld [vmem:[%s281 + $0x8] sm:$0xff]
        %v354 = vmul.f32 %v334, %v350
        %v355 = vmul.f32 %v349, %v351
        %v356 = vadd.f32 %v352, %v354
        %v357 = vadd.f32 %v353, %v355
        %358 = vst [vmem:[%s281] sm:$0xff] %v356
        %359 = vst [vmem:[%s281 + $0x8] sm:$0xff] %v357
        %v360 = vld [vmem:[%s288] sm:$0xff]
        %v361 = vld [vmem:[%s288 + $0x8] sm:$0xff]
        %v362 = vadd.f32 %v360, %v334
        %v363 = vadd.f32 %v361, %v349
        %364 = vst [vmem:[%s288] sm:$0xff] %v362
        %365 = vst [vmem:[%s288 + $0x8] sm:$0xff] %v363
        %v366 = vld [vmem:[%s295] sm:$0xff]
        %v367 = vld [vmem:[%s295 + $0x8] sm:$0xff]
        %v368 = vadd.f32 %v366, %v350
        %v369 = vadd.f32 %v367, %v351
        %370 = vst [vmem:[%s295] sm:$0xff] %v368
        %371 = vst [vmem:[%s295 + $0x8] sm:$0xff] %v369
        %s372 = sand.u32 %s104, 1
        %s373 = scalar_lea.sflag [#allocation4], %s372
        %s374 = sand.u32 %s104, 1
        %s375 = smul.addr %s374, 16
        %s376 = scalar_lea.vmem [#allocation7], %s375
        %s377 = sand.u32 %s28, 1
        %s378 = scalar_lea.sflag [#allocation9], %s377
        %s379 = sand.u32 %s130, 1
        %s380 = smul.addr %s379, 16
        %s381 = scalar_lea.vmem [#allocation8], %s380
        %s382 = sand.u32 %s28, 1
        %s383 = scalar_lea.sflag [#allocation9], %s382
        %s384 = sand.u32 %s156, 1
        %s385 = smul.addr %s384, 16
        %s386 = scalar_lea.vmem [#allocation10], %s385
        // Predicated region
        $region41: #{tpu_custom_call.1} parent=27 // pred_check
          %p387 = pneg %p114
        $region42: #{tpu_custom_call.1} parent=27 // pred_check_branch
          %389 = sbr.rel (%p387) target = $region44
        $region43: #{tpu_custom_call.1} parent=27 // pred_region
          %391 = vsyncadd %s373, 0
          %s392 = smul.addr %s32, 2
          %s393 = smul.addr %s392, 8
          %s394 = scalar_lea.hbm %s2, %s393
          %s395 = sshll.u32 %s376, 4
          %s396 = int_to_ptr.vmem [resolvable:$true] %s395
          %s397 = sshll.u32 %s394, 4
          %s398 = int_to_ptr.hbm [resolvable:$true] %s397
          %403 = dma.vmem_to_hbm [thread:$0]  %s396, 256, %s398, %s373, 128, 128, 8
        $region44: #{tpu_custom_call.1} parent=27 // pred_fallthru
          _
        // Predicated region
        $region45: #{tpu_custom_call.1} parent=27 // pred_check
          %p404 = pneg %p140
        $region46: #{tpu_custom_call.1} parent=27 // pred_check_branch
          %406 = sbr.rel (%p404) target = $region48
        $region47: #{tpu_custom_call.1} parent=27 // pred_region
          %408 = vsyncadd %s378, 0
          %s409 = smul.addr %s32, 2
          %s410 = smul.addr %s409, 8
          %s411 = scalar_lea.hbm %s3, %s410
          %s412 = sshll.u32 %s381, 4
          %s413 = int_to_ptr.vmem [resolvable:$true] %s412
          %s414 = sshll.u32 %s411, 4
          %s415 = int_to_ptr.hbm [resolvable:$true] %s414
          %420 = dma.vmem_to_hbm [thread:$0]  %s413, 256, %s415, %s378, 128, 128, 8
        $region48: #{tpu_custom_call.1} parent=27 // pred_fallthru
          _
        // Predicated region
        $region49: #{tpu_custom_call.1} parent=27 // pred_check
          %p421 = pneg %p166
        $region50: #{tpu_custom_call.1} parent=27 // pred_check_branch
          %423 = sbr.rel (%p421) target = $region52
        $region51: #{tpu_custom_call.1} parent=27 // pred_region
          %425 = vsyncadd %s383, 0
          %s426 = smul.addr %s32, 2
          %s427 = smul.addr %s426, 8
          %s428 = scalar_lea.hbm %s4, %s427
          %s429 = sshll.u32 %s386, 4
          %s430 = int_to_ptr.vmem [resolvable:$true] %s429
          %s431 = sshll.u32 %s428, 4
          %s432 = int_to_ptr.hbm [resolvable:$true] %s431
          %437 = dma.vmem_to_hbm [thread:$0]  %s430, 256, %s432, %s383, 128, 128, 8
        $region52: #{tpu_custom_call.1} parent=27 // pred_fallthru
          _
      $region28: #{tpu_custom_call.1} parent=5 // pred_fallthru
        _
      %p438 = scmp.le.s32.totalorder 2, %s23
      // Predicated region
      $region53: #{tpu_custom_call.1} parent=5 // pred_check
        %p439 = pneg %p438
      $region54: #{tpu_custom_call.1} parent=5 // pred_check_branch
        %441 = sbr.rel (%p439) target = $region56
      $region55: #{tpu_custom_call.1} parent=5 // pred_region
        %s442 = ssub.s32 %s23, 2
        // Predicated region
        $region57: #{tpu_custom_call.1} parent=55 // pred_check
          %p443 = pneg %p120
        $region58: #{tpu_custom_call.1} parent=55 // pred_check_branch
          %445 = sbr.rel (%p443) target = $region60
        $region59: #{tpu_custom_call.1} parent=55 // pred_region
          %s446 = sand.u32 %s105, 1
          %s447 = scalar_lea.sflag [#allocation4], %s446
          %s448 = sand.u32 %s105, 1
          %s449 = smul.addr %s448, 16
          %s450 = scalar_lea.vmem [#allocation7], %s449
          %452 = dma.done %s447, 256
        $region60: #{tpu_custom_call.1} parent=55 // pred_fallthru
          _
        // Predicated region
        $region61: #{tpu_custom_call.1} parent=55 // pred_check
          %p453 = pneg %p146
        $region62: #{tpu_custom_call.1} parent=55 // pred_check_branch
          %455 = sbr.rel (%p453) target = $region64
        $region63: #{tpu_custom_call.1} parent=55 // pred_region
          %s456 = sand.u32 %s29, 1
          %s457 = scalar_lea.sflag [#allocation9], %s456
          %s458 = sand.u32 %s131, 1
          %s459 = smul.addr %s458, 16
          %s460 = scalar_lea.vmem [#allocation8], %s459
          %462 = dma.done %s457, 256
        $region64: #{tpu_custom_call.1} parent=55 // pred_fallthru
          _
        // Predicated region
        $region65: #{tpu_custom_call.1} parent=55 // pred_check
          %p463 = pneg %p172
        $region66: #{tpu_custom_call.1} parent=55 // pred_check_branch
          %465 = sbr.rel (%p463) target = $region68
        $region67: #{tpu_custom_call.1} parent=55 // pred_region
          %s466 = sand.u32 %s29, 1
          %s467 = scalar_lea.sflag [#allocation9], %s466
          %s468 = sand.u32 %s157, 1
          %s469 = smul.addr %s468, 16
          %s470 = scalar_lea.vmem [#allocation10], %s469
          %472 = dma.done %s467, 256
        $region68: #{tpu_custom_call.1} parent=55 // pred_fallthru
          _
      $region56: #{tpu_custom_call.1} parent=5 // pred_fallthru
        _
    $region6: #{tpu_custom_call.1} parent=1 // loop_footer
      %s27 = sadd.s32 1, %s23
    $region7: #{tpu_custom_call.1} parent=1 // loop_footer_branch
      %22 = sbr.rel target = $region3
    $region8: #{tpu_custom_call.1} parent=1 // loop_exit
      _
    %473 = vsyncpa [#allocation3], 1
    %s474 = scalar_lea.sflag [#allocation3], 1
    %475 = vsyncpa %s474, 1
    %476 = vsyncpa [#allocation6], 1
    %s477 = scalar_lea.sflag [#allocation6], 1
    %478 = vsyncpa %s477, 1
    %479 = vsyncpa [#allocation4], 1
    %s480 = scalar_lea.sflag [#allocation4], 1
    %481 = vsyncpa %s480, 1
    %482 = vsyncpa [#allocation9], 1
    %s483 = scalar_lea.sflag [#allocation9], 1
    %484 = vsyncpa %s483, 1

</llo_original>
